<compile_context>
chip_gen: v5e
topology: v5e:2x2
jax: 0.10.0
libtpu: 0.0.40
codegen_flags: <defaults>
</compile_context>

<pallas_src>
import functools

import jax
import jax.numpy as jnp
from jax.experimental import pallas as pl
from jax.experimental.pallas import tpu as pltpu


def _temporal_attention_kernel(w_ref, u3_ref, x2d_ref, xr_ref, o_ref, *, B, N, F, T):
    """Single invocation (no grid) computes the attention for ALL batches.

    w_ref  : (N*F, N)     VMEM  fused weight  W[(n,f), n'] = U1[n] * U2[f, n']
    u3_ref : (F,)         SMEM  U3 scalars
    x2d_ref: (B*T, N*F)   VMEM  x2d[b*T+t, n*F+f] = x[b, n, f, t]
    xr_ref : (F, B, N, T) VMEM  xr[f, b, n, t]    = x[b, n, f, t]
    o_ref  : (B, T, T)    VMEM  softmax(product, dim=1)
    """
    # lhs for every batch with ONE MXU matmul (U1/U2 fused into W).
    # lhs[(b,t), n'] = sum_{n,f} x[b,n,f,t] * U1[n] * U2[f,n']
    lhs = jnp.dot(x2d_ref[...], w_ref[...],
                  preferred_element_type=jnp.float32)          # (B*T, N)

    # rhs on the VPU (overlaps with the MXU matmul): F scalar multiply-adds,
    # SMEM scalars hoisted into locals once.
    u3 = [u3_ref[f] for f in range(F)]
    rhs = u3[0] * xr_ref[0]
    for f in range(1, F):
        rhs = rhs + u3[f] * xr_ref[f]                          # (B, N, T)

    # product[b, t1, t2] = sum_n lhs[b, t1, n] * rhs[b, n, t2], then softmax over
    # torch dim=1 (axis 0 of each per-batch tile). Statically unrolled over B
    # (B is tiny); no (B*T)^2 intermediate, no unaligned lane slicing.
    # TODO(synk): for large B (and to use both TensorCores on v7x), move the batch
    # to a "parallel" grid axis / pl.core_map and cap VMEM via CompilerParams.
    for b in range(B):
        lhs_b = lhs[b * T:(b + 1) * T, :]                      # (T, N) sublane-aligned
        prod = jnp.dot(lhs_b, rhs[b],
                       preferred_element_type=jnp.float32)     # (T, T)
        m = jnp.max(prod, axis=0, keepdims=True)
        e = jnp.exp(prod - m)
        o_ref[b] = e / jnp.sum(e, axis=0, keepdims=True)       # exact divide


def temporal_attention(x, U1, U2, U3):
    """x: (B, N, F, T);  U1: (N,);  U2: (F, N);  U3: (F,).  Returns (B, T, T) f32."""
    B, N, F, T = x.shape
    BT, NF = B * T, N * F

    xf = x.astype(jnp.float32)
    u1 = U1.astype(jnp.float32)
    u2 = U2.astype(jnp.float32)
    u3 = U3.reshape(F).astype(jnp.float32)

    # Fused weight (parameter-only transform, computed once, wrapper-side):
    #   W[n*F + f, n'] = U1[n] * U2[f, n']   so that   lhs2d = x2d @ W.
    w = (u1[:, None, None] * u2[None, :, :]).reshape(NF, N)

    # Layout plumbing (pure XLA transposes, wrapper-side):
    x2d = jnp.transpose(xf, (0, 3, 1, 2)).reshape(BT, NF)      # (B*T, N*F)
    xr = jnp.transpose(xf, (2, 0, 1, 3))                       # (F, B, N, T)

    kernel = functools.partial(_temporal_attention_kernel, B=B, N=N, F=F, T=T)

    flops = (2 * BT * NF * N        # lhs matmul
             + 2 * F * B * N * T    # rhs multiply-adds
             + 2 * B * T * N * T    # per-batch products
             + 4 * B * T * T)       # softmax epilogue
    transcendentals = B * T * T
    bytes_accessed = 4 * (x2d.size + xr.size + w.size + u3.size + B * T * T)

    out = pl.pallas_call(
        kernel,
        out_shape=jax.ShapeDtypeStruct((B, T, T), jnp.float32),
        in_specs=[
            pl.BlockSpec(memory_space=pltpu.MemorySpace.VMEM),  # W (fused U1*U2)
            pl.BlockSpec(memory_space=pltpu.MemorySpace.SMEM),  # U3 scalars
            pl.BlockSpec(memory_space=pltpu.MemorySpace.VMEM),  # x2d
            pl.BlockSpec(memory_space=pltpu.MemorySpace.VMEM),  # xr
        ],
        out_specs=pl.BlockSpec(memory_space=pltpu.MemorySpace.VMEM),
        cost_estimate=pl.CostEstimate(
            flops=flops,
            transcendentals=transcendentals,
            bytes_accessed=bytes_accessed),
    )(w, u3, x2d, xr)
    return out


def _reference(x, U1, U2, U3):
    # Pure-JAX mirror of the PyTorch forward for verification.
    lhs = jnp.matmul(jnp.matmul(jnp.transpose(x, (0, 3, 2, 1)), U1), U2)   # (B, T, N)
    rhs = jnp.einsum('f,bnft->bnt', U3, x)                                 # (B, N, T)
    product = jnp.matmul(lhs, rhs)                                         # (B, T, T)
    return jax.nn.softmax(product, axis=1)


if __name__ == "__main__":
    # Small shapes consistent with the module:
    #   batch B=2, num_of_vertices N=16, in_channels F_in=4, num_of_timesteps T=8
    B, N, F, T = 2, 16, 4, 8

    key = jax.random.PRNGKey(0)
    kx, k1, k2, k3 = jax.random.split(key, 4)
    # torch.FloatTensor params are uninitialized in the module __init__;
    # use a deterministic synthetic init here.
    x = jax.random.normal(kx, (B, N, F, T), dtype=jnp.float32)
    U1 = jax.random.normal(k1, (N,), dtype=jnp.float32)
    U2 = jax.random.normal(k2, (F, N), dtype=jnp.float32)
    U3 = jax.random.normal(k3, (F,), dtype=jnp.float32)

    out = jax.block_until_ready(temporal_attention(x, U1, U2, U3))

    ref = _reference(x, U1, U2, U3)
    assert out.shape == (B, T, T)
    # Exact softmax division now -> tight tolerance.
    assert bool(jnp.allclose(out, ref, atol=1e-4, rtol=1e-4)), "mismatch vs reference"
    print("KERNEL_OK")
</pallas_src>

<mosaic_0001>
module attributes {stable_mosaic.version = 11 : i64} {
  func.func @_temporal_attention_kernel(%arg0: memref<64x16xf32, #tpu.memory_space<vmem>>, %arg1: memref<4xf32, #tpu.memory_space<smem>>, %arg2: memref<16x64xf32, #tpu.memory_space<vmem>>, %arg3: memref<4x2x16x8xf32, #tpu.memory_space<vmem>>, %arg4: memref<2x8x8xf32, #tpu.memory_space<vmem>>) attributes {dimension_semantics = [], scalar_prefetch = 0 : i64, scratch_operands = 0 : i64, tpu.core_type = #tpu.core_type<tc>} {
    %c0 = arith.constant 0 : index
    %c0_0 = arith.constant 0 : index
    %0 = vector.load %arg2[%c0, %c0_0] : memref<16x64xf32, #tpu.memory_space<vmem>>, vector<16x64xf32>
    %c0_1 = arith.constant 0 : index
    %c0_2 = arith.constant 0 : index
    %1 = vector.load %arg0[%c0_1, %c0_2] : memref<64x16xf32, #tpu.memory_space<vmem>>, vector<64x16xf32>
    %cst = arith.constant dense<0.000000e+00> : vector<16x16xf32>
    %2 = tpu.matmul %0, %1, %cst {dimension_numbers = #tpu.dot_dimension_numbers<[1], [0], [0], [1], [0, 0, 1, 1], [], []>} : vector<16x64xf32>, vector<64x16xf32>, vector<16x16xf32> -> vector<16x16xf32>
    %c0_3 = arith.constant 0 : index
    %3 = memref.load %arg1[%c0_3] : memref<4xf32, #tpu.memory_space<smem>>
    %c1 = arith.constant 1 : index
    %4 = memref.load %arg1[%c1] : memref<4xf32, #tpu.memory_space<smem>>
    %c2 = arith.constant 2 : index
    %5 = memref.load %arg1[%c2] : memref<4xf32, #tpu.memory_space<smem>>
    %c3 = arith.constant 3 : index
    %6 = memref.load %arg1[%c3] : memref<4xf32, #tpu.memory_space<smem>>
    %c0_4 = arith.constant 0 : index
    %c0_5 = arith.constant 0 : index
    %c0_6 = arith.constant 0 : index
    %c0_7 = arith.constant 0 : index
    %7 = vector.load %arg3[%c0_4, %c0_5, %c0_6, %c0_7] : memref<4x2x16x8xf32, #tpu.memory_space<vmem>>, vector<1x2x16x8xf32>
    %8 = vector.shape_cast %7 : vector<1x2x16x8xf32> to vector<2x16x8xf32>
    %9 = vector.broadcast %3 : f32 to vector<2x16x8xf32>
    %10 = arith.mulf %9, %8 : vector<2x16x8xf32>
    %c1_8 = arith.constant 1 : index
    %c0_9 = arith.constant 0 : index
    %c0_10 = arith.constant 0 : index
    %c0_11 = arith.constant 0 : index
    %11 = vector.load %arg3[%c1_8, %c0_9, %c0_10, %c0_11] : memref<4x2x16x8xf32, #tpu.memory_space<vmem>>, vector<1x2x16x8xf32>
    %12 = vector.shape_cast %11 : vector<1x2x16x8xf32> to vector<2x16x8xf32>
    %13 = vector.broadcast %4 : f32 to vector<2x16x8xf32>
    %14 = arith.mulf %13, %12 : vector<2x16x8xf32>
    %15 = arith.addf %10, %14 : vector<2x16x8xf32>
    %c2_12 = arith.constant 2 : index
    %c0_13 = arith.constant 0 : index
    %c0_14 = arith.constant 0 : index
    %c0_15 = arith.constant 0 : index
    %16 = vector.load %arg3[%c2_12, %c0_13, %c0_14, %c0_15] : memref<4x2x16x8xf32, #tpu.memory_space<vmem>>, vector<1x2x16x8xf32>
    %17 = vector.shape_cast %16 : vector<1x2x16x8xf32> to vector<2x16x8xf32>
    %18 = vector.broadcast %5 : f32 to vector<2x16x8xf32>
    %19 = arith.mulf %18, %17 : vector<2x16x8xf32>
    %20 = arith.addf %15, %19 : vector<2x16x8xf32>
    %c3_16 = arith.constant 3 : index
    %c0_17 = arith.constant 0 : index
    %c0_18 = arith.constant 0 : index
    %c0_19 = arith.constant 0 : index
    %21 = vector.load %arg3[%c3_16, %c0_17, %c0_18, %c0_19] : memref<4x2x16x8xf32, #tpu.memory_space<vmem>>, vector<1x2x16x8xf32>
    %22 = vector.shape_cast %21 : vector<1x2x16x8xf32> to vector<2x16x8xf32>
    %23 = vector.broadcast %6 : f32 to vector<2x16x8xf32>
    %24 = arith.mulf %23, %22 : vector<2x16x8xf32>
    %25 = arith.addf %20, %24 : vector<2x16x8xf32>
    %26 = vector.extract_strided_slice %2 {offsets = [0, 0], sizes = [8, 16], strides = [1, 1]} : vector<16x16xf32> to vector<8x16xf32>
    %27 = vector.extract_strided_slice %25 {offsets = [0, 0, 0], sizes = [1, 16, 8], strides = [1, 1, 1]} : vector<2x16x8xf32> to vector<1x16x8xf32>
    %28 = vector.shape_cast %27 : vector<1x16x8xf32> to vector<16x8xf32>
    %cst_20 = arith.constant dense<0.000000e+00> : vector<8x8xf32>
    %29 = tpu.matmul %26, %28, %cst_20 {dimension_numbers = #tpu.dot_dimension_numbers<[1], [0], [0], [1], [0, 0, 1, 1], [], []>} : vector<8x16xf32>, vector<16x8xf32>, vector<8x8xf32> -> vector<8x8xf32>
    %cst_21 = arith.constant dense<0xFF800000> : vector<8xf32>
    %30 = vector.multi_reduction <maximumf>, %29, %cst_21 [0] : vector<8x8xf32> to vector<8xf32>
    %31 = vector.shape_cast %30 : vector<8xf32> to vector<1x8xf32>
    %32 = vector.broadcast %31 : vector<1x8xf32> to vector<8x8xf32>
    %33 = arith.subf %29, %32 : vector<8x8xf32>
    %34 = math.exp %33 : vector<8x8xf32>
    %cst_22 = arith.constant dense<0.000000e+00> : vector<8xf32>
    %35 = vector.multi_reduction <add>, %34, %cst_22 [0] : vector<8x8xf32> to vector<8xf32>
    %36 = vector.shape_cast %35 : vector<8xf32> to vector<1x8xf32>
    %37 = vector.broadcast %36 : vector<1x8xf32> to vector<8x8xf32>
    %38 = arith.divf %34, %37 : vector<8x8xf32>
    %c0_23 = arith.constant 0 : index
    %c0_24 = arith.constant 0 : index
    %c0_25 = arith.constant 0 : index
    %39 = vector.load %arg4[%c0_23, %c0_24, %c0_25] : memref<2x8x8xf32, #tpu.memory_space<vmem>>, vector<1x8x8xf32>
    %40 = vector.shape_cast %39 : vector<1x8x8xf32> to vector<8x8xf32>
    %41 = vector.shape_cast %38 : vector<8x8xf32> to vector<1x8x8xf32>
    tpu.vector_store %arg4[%c0_23, %c0_24, %c0_25], %41 {strides = array<i32>} : memref<2x8x8xf32, #tpu.memory_space<vmem>>, vector<1x8x8xf32>,
    %42 = vector.extract_strided_slice %2 {offsets = [8, 0], sizes = [8, 16], strides = [1, 1]} : vector<16x16xf32> to vector<8x16xf32>
    %43 = vector.extract_strided_slice %25 {offsets = [1, 0, 0], sizes = [1, 16, 8], strides = [1, 1, 1]} : vector<2x16x8xf32> to vector<1x16x8xf32>
    %44 = vector.shape_cast %43 : vector<1x16x8xf32> to vector<16x8xf32>
    %cst_26 = arith.constant dense<0.000000e+00> : vector<8x8xf32>
    %45 = tpu.matmul %42, %44, %cst_26 {dimension_numbers = #tpu.dot_dimension_numbers<[1], [0], [0], [1], [0, 0, 1, 1], [], []>} : vector<8x16xf32>, vector<16x8xf32>, vector<8x8xf32> -> vector<8x8xf32>
    %cst_27 = arith.constant dense<0xFF800000> : vector<8xf32>
    %46 = vector.multi_reduction <maximumf>, %45, %cst_27 [0] : vector<8x8xf32> to vector<8xf32>
    %47 = vector.shape_cast %46 : vector<8xf32> to vector<1x8xf32>
    %48 = vector.broadcast %47 : vector<1x8xf32> to vector<8x8xf32>
    %49 = arith.subf %45, %48 : vector<8x8xf32>
    %50 = math.exp %49 : vector<8x8xf32>
    %cst_28 = arith.constant dense<0.000000e+00> : vector<8xf32>
    %51 = vector.multi_reduction <add>, %50, %cst_28 [0] : vector<8x8xf32> to vector<8xf32>
    %52 = vector.shape_cast %51 : vector<8xf32> to vector<1x8xf32>
    %53 = vector.broadcast %52 : vector<1x8xf32> to vector<8x8xf32>
    %54 = arith.divf %50, %53 : vector<8x8xf32>
    %c1_29 = arith.constant 1 : index
    %c0_30 = arith.constant 0 : index
    %c0_31 = arith.constant 0 : index
    %55 = vector.load %arg4[%c1_29, %c0_30, %c0_31] : memref<2x8x8xf32, #tpu.memory_space<vmem>>, vector<1x8x8xf32>
    %56 = vector.shape_cast %55 : vector<1x8x8xf32> to vector<8x8xf32>
    %57 = vector.shape_cast %54 : vector<8x8xf32> to vector<1x8x8xf32>
    tpu.vector_store %arg4[%c1_29, %c0_30, %c0_31], %57 {strides = array<i32>} : memref<2x8x8xf32, #tpu.memory_space<vmem>>, vector<1x8x8xf32>,
    return
  }
}

</mosaic_0001>

<llo_original>
// kernel: tpu_custom_call.1
$region0: #{tpu_custom_call.1}
  #allocation0 [shape = 'u32[]', space=smem, size = 0x4, offset = 0x4, fixed_abs, tag = 'smem constant byte address 0x4 - core index']
  #allocation1 [shape = 'u32[72,128]{1,0:T(1,128)}', space=vmem, size = 0x9000, scoped, tag = 'internal scratch']
  %s0 = inlined_call_operand.vmem [shape: f32[64,16], index: 0, kind: input, shape index: {}]
  %s1 = inlined_call_operand.vmem [shape: f32[4], index: 1, kind: input, shape index: {}]
  %s2 = inlined_call_operand.vmem [shape: f32[16,64], index: 2, kind: input, shape index: {}]
  %s3 = inlined_call_operand.vmem [shape: f32[4,2,16,8], index: 3, kind: input, shape index: {}]
  %s4 = inlined_call_operand.hbm [shape: f32[2,8,8], index: 4, kind: output, shape index: {}]
  %s5 = sld [smem:[#allocation0]]
  $region30: #{tpu_custom_call.1} parent=0
    _
  %s7 = ssub.s32 1, %s5
  %s8 = scalar_select 0, %s7, %s5
  $region1: #{tpu_custom_call.1} parent=0
    #allocation2 [shape = 'u8[512]{0}', space=smem, size = 0x200, scoped, tag = 'input window, operand 1, single buffered']
    #allocation3 [shape = 's32[1]{0}', space=sflag, size = 0x4, scoped, tag = 'scoped memory for tpu_custom_call.1']
    #allocation4 [shape = 's32[1]{0}', space=sflag, size = 0x4, scoped, tag = 'scoped memory for tpu_custom_call.1']
    #allocation5 [shape = 'u8[8192]{0}', space=vmem, size = 0x2000, scoped, tag = 'output window, operand 0, single buffered']
    %9 = vsyncpa [#allocation4], 0
    %10 = vsyncpa [#allocation3], 0
    // Predicated region
    $region2: #{tpu_custom_call.1} parent=1 // pred_check
      _
    $region3: #{tpu_custom_call.1} parent=1 // pred_check_branch
      %12 = sbr.rel (0) target = $region5
    $region4: #{tpu_custom_call.1} parent=1 // pred_region
      _
    $region5: #{tpu_custom_call.1} parent=1 // pred_fallthru
      _
    // Predicated region
    $region6: #{tpu_custom_call.1} parent=1 // pred_check
      _
    $region7: #{tpu_custom_call.1} parent=1 // pred_check_branch
      %14 = sbr.rel (0) target = $region9
    $region8: #{tpu_custom_call.1} parent=1 // pred_region
      %16 = vsyncadd [#allocation4], 0
      %s18 = sshll.u32 %s1, 4
      %s19 = int_to_ptr.vmem [resolvable:$true] %s18
      %21 = dma.vmem_to_smem %s19, 16, [#allocation2], [#allocation4]
    $region9: #{tpu_custom_call.1} parent=1 // pred_fallthru
      _
    // Predicated region
    $region10: #{tpu_custom_call.1} parent=1 // pred_check
      _
    $region11: #{tpu_custom_call.1} parent=1 // pred_check_branch
      %23 = sbr.rel (0) target = $region13
    $region12: #{tpu_custom_call.1} parent=1 // pred_region
      _
    $region13: #{tpu_custom_call.1} parent=1 // pred_fallthru
      _
    // Predicated region
    $region14: #{tpu_custom_call.1} parent=1 // pred_check
      _
    $region15: #{tpu_custom_call.1} parent=1 // pred_check_branch
      %25 = sbr.rel (0) target = $region17
    $region16: #{tpu_custom_call.1} parent=1 // pred_region
      _
    $region17: #{tpu_custom_call.1} parent=1 // pred_fallthru
      _
    // Predicated region
    $region18: #{tpu_custom_call.1} parent=1 // pred_check
      _
    $region19: #{tpu_custom_call.1} parent=1 // pred_check_branch
      %27 = sbr.rel (0) target = $region21
    $region20: #{tpu_custom_call.1} parent=1 // pred_region
      %29 = dma.done [#allocation4], 16
    $region21: #{tpu_custom_call.1} parent=1 // pred_fallthru
      _
    %30 = sfence
    %v31 = vld [vmem:[%s2] sm:$0xff]
    %v32 = vld [vmem:[%s2 + $0x8] sm:$0xff]
    %v33 = vld [vmem:[%s0] sm:$0xff]
    %v34 = vld [vmem:[%s0 + $0x8] sm:$0xff]
    %v35 = vld [vmem:[%s0 + $0x10] sm:$0xff]
    %v36 = vld [vmem:[%s0 + $0x18] sm:$0xff]
    %v37 = vld [vmem:[%s0 + $0x20] sm:$0xff]
    %v38 = vld [vmem:[%s0 + $0x28] sm:$0xff]
    %v39 = vld [vmem:[%s0 + $0x30] sm:$0xff]
    %v40 = vld [vmem:[%s0 + $0x38] sm:$0xff]
    %vm41 = vcmask 523264
    %v43 = vsel %vm41, %v31, 0
    %v46 = vsel %vm41, %v32, 0
    %48 = vmatpush.msra.mxu0 0.0
    %49 = vmatpush.msra.mxu0 0.0
    %50 = vmatpush.msra.mxu0 0.0
    %51 = vmatpush.msra.mxu0 0.0
    %52 = vmatpush.msra.mxu0 0.0
    %53 = vmatpush.msra.mxu0 0.0
    %54 = vmatpush.msra.mxu0 0.0
    %55 = vmatpush.msra.mxu0 0.0
    %56 = vmatpush.msra.mxu0 %v40
    %57 = vmatpush.msra.mxu0 %v39
    %58 = vmatpush.msra.mxu0 %v38
    %59 = vmatpush.msra.mxu0 %v37
    %60 = vmatpush.msra.mxu0 %v36
    %61 = vmatpush.msra.mxu0 %v35
    %62 = vmatpush.msra.mxu0 %v34
    %63 = vmatpush.msra.mxu0 %v33
    %64 = vmatmul.f32.gmra.mxu0 %v43
    %v65 = vpop.f32.mrf.mxu0
    %v66 = vadd.f32 0.0, %v65
    %67 = vmatmul.f32.gmra.mxu0 %v46
    %v68 = vpop.f32.mrf.mxu0
    %v69 = vadd.f32 0.0, %v68
    %70 = vdwg.mxu0
    %s71 = sld [smem:[#allocation2]]
    %s72 = sld [smem:[#allocation2 + $0x1]]
    %s73 = sld [smem:[#allocation2 + $0x2]]
    %s74 = sld [smem:[#allocation2 + $0x3]]
    %v75 = vld [vmem:[%s3] sm:$0xff]
    %v76 = vld [vmem:[%s3 + $0x8] sm:$0xff]
    %v77 = vld [vmem:[%s3 + $0x10] sm:$0xff]
    %v78 = vld [vmem:[%s3 + $0x18] sm:$0xff]
    %v79 = vstv %s71
    %v80 = vmul.f32 %v79, %v75
    %v81 = vmul.f32 %v79, %v76
    %v82 = vmul.f32 %v79, %v77
    %v83 = vmul.f32 %v79, %v78
    %s84 = scalar_lea.vmem %s3, 32
    %v85 = vld [vmem:[%s84] sm:$0xff]
    %v86 = vld [vmem:[%s84 + $0x8] sm:$0xff]
    %v87 = vld [vmem:[%s84 + $0x10] sm:$0xff]
    %v88 = vld [vmem:[%s84 + $0x18] sm:$0xff]
    %v89 = vstv %s72
    %v90 = vmul.f32 %v89, %v85
    %v91 = vmul.f32 %v89, %v86
    %v92 = vmul.f32 %v89, %v87
    %v93 = vmul.f32 %v89, %v88
    %v94 = vadd.f32 %v80, %v90
    %v95 = vadd.f32 %v81, %v91
    %v96 = vadd.f32 %v82, %v92
    %v97 = vadd.f32 %v83, %v93
    %s98 = scalar_lea.vmem %s3, 64
    %v99 = vld [vmem:[%s98] sm:$0xff]
    %v100 = vld [vmem:[%s98 + $0x8] sm:$0xff]
    %v101 = vld [vmem:[%s98 + $0x10] sm:$0xff]
    %v102 = vld [vmem:[%s98 + $0x18] sm:$0xff]
    %v103 = vstv %s73
    %v104 = vmul.f32 %v103, %v99
    %v105 = vmul.f32 %v103, %v100
    %v106 = vmul.f32 %v103, %v101
    %v107 = vmul.f32 %v103, %v102
    %v108 = vadd.f32 %v94, %v104
    %v109 = vadd.f32 %v95, %v105
    %v110 = vadd.f32 %v96, %v106
    %v111 = vadd.f32 %v97, %v107
    %s112 = scalar_lea.vmem %s3, 96
    %v113 = vld [vmem:[%s112] sm:$0xff]
    %v114 = vld [vmem:[%s112 + $0x8] sm:$0xff]
    %v115 = vld [vmem:[%s112 + $0x10] sm:$0xff]
    %v116 = vld [vmem:[%s112 + $0x18] sm:$0xff]
    %v117 = vstv %s74
    %v118 = vmul.f32 %v117, %v113
    %v119 = vmul.f32 %v117, %v114
    %v120 = vmul.f32 %v117, %v115
    %v121 = vmul.f32 %v117, %v116
    %v122 = vadd.f32 %v108, %v118
    %v123 = vadd.f32 %v109, %v119
    %v124 = vadd.f32 %v110, %v120
    %v125 = vadd.f32 %v111, %v121
    %vm126 = vcmask 130048
    %v128 = vsel %vm126, %v66, 0
    %130 = vmatpush.msra.mxu0 0.0
    %131 = vmatpush.msra.mxu0 0.0
    %132 = vmatpush.msra.mxu0 0.0
    %133 = vmatpush.msra.mxu0 0.0
    %134 = vmatpush.msra.mxu0 0.0
    %135 = vmatpush.msra.mxu0 0.0
    %136 = vmatpush.msra.mxu0 0.0
    %137 = vmatpush.msra.mxu0 0.0
    %138 = vmatpush.msra.mxu0 0.0
    %139 = vmatpush.msra.mxu0 0.0
    %140 = vmatpush.msra.mxu0 0.0
    %141 = vmatpush.msra.mxu0 0.0
    %142 = vmatpush.msra.mxu0 0.0
    %143 = vmatpush.msra.mxu0 0.0
    %144 = vmatpush.msra.mxu0 %v123
    %145 = vmatpush.msra.mxu0 %v122
    %146 = vmatmul.f32.gmra.mxu0 %v128
    %v147 = vpop.f32.mrf.mxu0
    %v148 = vadd.f32 0.0, %v147
    %149 = vdwg.mxu0
    %vm150 = vcmask 64512
    %v151 = vsel %vm150, %v148, -inf
    %v152 = vrot.slane %v151, 4
    %v153 = vmax.f32 %v151, %v152
    %v154 = vrot.slane %v153, 2
    %v155 = vmax.f32 %v153, %v154
    %v156 = vrot.slane %v155, 1
    %v157 = vmax.f32 %v155, %v156
    %v158 = vsub.f32 %v148, %v157
    %v159 = vmul.f32 %v158, 1.442695
    %v160 = vpow.pop %v159
    %v161 = vsel %vm150, %v160, 0.0
    %v162 = vrot.slane %v161, 4
    %v163 = vadd.f32 %v161, %v162
    %v164 = vrot.slane %v163, 2
    %v165 = vadd.f32 %v163, %v164
    %v166 = vrot.slane %v165, 1
    %v167 = vadd.f32 %v165, %v166
    %v168 = vrcp.pop %v167
    %v169 = vmul.f32 %v167, %v168
    %v170 = vsub.f32 1.0, %v169
    %v171 = vmul.f32 %v168, %v170
    %v172 = vadd.f32 %v168, %v171
    %vm173 = vweird.f32 %v167
    %vm174 = vweird.f32 %v168
    %vm175 = vmor %vm173, %vm174
    %v176 = vsel %vm175, %v168, %v172
    %v177 = vand.u32 2147483647, %v167
    %vm178 = vcmp.eq.f32.partialorder %v177, 8.507059e+37
    %v179 = vand.u32 %v167, 2147483648
    %v180 = vor.u32 1.1754944e-38, %v179
    %v181 = vsel %vm178, %v180, %v176
    %v182 = vmul.f32 %v160, %v181
    %183 = vst.msk [vmem:[#allocation5] sm:$0xff] %vm150, %v182
    %v185 = vsel %vm126, %v69, 0
    %187 = vmatpush.msra.mxu0 0.0
    %188 = vmatpush.msra.mxu0 0.0
    %189 = vmatpush.msra.mxu0 0.0
    %190 = vmatpush.msra.mxu0 0.0
    %191 = vmatpush.msra.mxu0 0.0
    %192 = vmatpush.msra.mxu0 0.0
    %193 = vmatpush.msra.mxu0 0.0
    %194 = vmatpush.msra.mxu0 0.0
    %195 = vmatpush.msra.mxu0 0.0
    %196 = vmatpush.msra.mxu0 0.0
    %197 = vmatpush.msra.mxu0 0.0
    %198 = vmatpush.msra.mxu0 0.0
    %199 = vmatpush.msra.mxu0 0.0
    %200 = vmatpush.msra.mxu0 0.0
    %201 = vmatpush.msra.mxu0 %v125
    %202 = vmatpush.msra.mxu0 %v124
    %203 = vmatmul.f32.gmra.mxu0 %v185
    %v204 = vpop.f32.mrf.mxu0
    %v205 = vadd.f32 0.0, %v204
    %206 = vdwg.mxu0
    %v207 = vsel %vm150, %v205, -inf
    %v208 = vrot.slane %v207, 4
    %v209 = vmax.f32 %v207, %v208
    %v210 = vrot.slane %v209, 2
    %v211 = vmax.f32 %v209, %v210
    %v212 = vrot.slane %v211, 1
    %v213 = vmax.f32 %v211, %v212
    %v214 = vsub.f32 %v205, %v213
    %v215 = vmul.f32 %v214, 1.442695
    %v216 = vpow.pop %v215
    %v217 = vsel %vm150, %v216, 0.0
    %v218 = vrot.slane %v217, 4
    %v219 = vadd.f32 %v217, %v218
    %v220 = vrot.slane %v219, 2
    %v221 = vadd.f32 %v219, %v220
    %v222 = vrot.slane %v221, 1
    %v223 = vadd.f32 %v221, %v222
    %v224 = vrcp.pop %v223
    %v225 = vmul.f32 %v223, %v224
    %v226 = vsub.f32 1.0, %v225
    %v227 = vmul.f32 %v224, %v226
    %v228 = vadd.f32 %v224, %v227
    %vm229 = vweird.f32 %v223
    %vm230 = vweird.f32 %v224
    %vm231 = vmor %vm229, %vm230
    %v232 = vsel %vm231, %v224, %v228
    %v233 = vand.u32 2147483647, %v223
    %vm234 = vcmp.eq.f32.partialorder %v233, 8.507059e+37
    %v235 = vand.u32 %v223, 2147483648
    %v236 = vor.u32 1.1754944e-38, %v235
    %v237 = vsel %vm234, %v236, %v232
    %v238 = vmul.f32 %v216, %v237
    %s239 = scalar_lea.vmem [#allocation5], 8
    %240 = vst.msk [vmem:[%s239] sm:$0xff] %vm150, %v238
    // Predicated region
    $region22: #{tpu_custom_call.1} parent=1 // pred_check
      _
    $region23: #{tpu_custom_call.1} parent=1 // pred_check_branch
      %242 = sbr.rel (0) target = $region25
    $region24: #{tpu_custom_call.1} parent=1 // pred_region
      %244 = vsyncadd [#allocation3], 0
      %s245 = sshll.u32 [#allocation5], 4
      %s246 = int_to_ptr.vmem [resolvable:$true] %s245
      %s247 = sshll.u32 %s4, 4
      %s248 = int_to_ptr.hbm [resolvable:$true] %s247
      %253 = dma.vmem_to_hbm [thread:$0]  %s246, 256, %s248, [#allocation3], 128, 128, 8
    $region25: #{tpu_custom_call.1} parent=1 // pred_fallthru
      _
    // Predicated region
    $region26: #{tpu_custom_call.1} parent=1 // pred_check
      _
    $region27: #{tpu_custom_call.1} parent=1 // pred_check_branch
      %255 = sbr.rel (0) target = $region29
    $region28: #{tpu_custom_call.1} parent=1 // pred_region
      %257 = dma.done [#allocation3], 256
    $region29: #{tpu_custom_call.1} parent=1 // pred_fallthru
      _
    %258 = vsyncpa [#allocation3], 1
    %259 = vsyncpa [#allocation4], 1

</llo_original>
